<compile_context>
chip_gen: v7x
topology: tpu7x:2x2x1
jax: 0.10.0
libtpu: 0.0.40
codegen_flags: <defaults>
</compile_context>

<pallas_src>
import functools

import jax
import jax.numpy as jnp
from jax.experimental import pallas as pl
from jax.experimental.pallas import tpu as pltpu


# ----------------------------------------------------------------------------
# Fused kernel: InstanceNorm2d(affine=True)  +  fn        (one block = Bt samples)
# ----------------------------------------------------------------------------
def _prenorm_kernel(*refs, fn, eps, n_fn_params, hw_valid, apply_beta):
    x_ref, gamma_ref, beta_ref = refs[0], refs[1], refs[2]
    fn_refs = refs[3:3 + n_fn_params]
    out_ref = refs[3 + n_fn_params]

    x = x_ref[...].astype(jnp.float32)                      # (Bt, C, HWp), lane-dense
    hwp = x.shape[-1]
    inv_n = jnp.float32(1.0 / hw_valid)

    # per-(sample, channel) statistics over the spatial axis (biased variance, like PyTorch)
    mean = jnp.sum(x, axis=-1, keepdims=True) * inv_n       # pad lanes are 0 -> sum exact
    d = x - mean
    if hw_valid != hwp:                                      # static branch (trace time)
        lane = jax.lax.broadcasted_iota(jnp.int32, x.shape, dimension=2)
        d = jnp.where(lane < hw_valid, d, 0.0)               # mask pad lanes out of the stats
    var = jnp.sum(d * d, axis=-1, keepdims=True) * inv_n     # centered -> no cancellation
    var = jnp.maximum(var, 0.0)
    inv = jax.lax.rsqrt(var + eps)                            # (Bt, C, 1)

    scale = inv * gamma_ref[...]                              # combine (C,1) columns first:
    y = d * scale                                             # one full-tile multiply saved
    if apply_beta:                                            # skipped when beta is folded
        y = y + beta_ref[...]                                 # into the fused fn's bias

    # fused fn (applied on the whole Bt block; never leaves VMEM)
    out_ref[...] = fn(y, *(r[...] for r in fn_refs)).astype(out_ref.dtype)


# ----------------------------------------------------------------------------
# Wrapper
# ----------------------------------------------------------------------------
def prenorm_forward(x, gamma, beta, fn=None, fn_params=(), c_out=None, eps=1e-5,
                    block_b=None, out_dtype=None, fold_beta_into_fn=False):
    """PreNorm: fn(InstanceNorm2d(dim, affine=True)(x)).

    x:       (B, C, H, W), any float dtype (kept native; stats in f32 in-kernel)
    gamma:   (C,) InstanceNorm weight
    beta:    (C,) InstanceNorm bias
    fn:      JAX-traceable per-block function (Bt, C, HWp), *fn_params -> (Bt, c_out, HWp);
             None = identity (pure PreNorm norm output).
    fold_beta_into_fn: if True the kernel skips the "+ beta" add (only valid when the
             caller folded beta into the fn parameters, i.e. fn is affine-linear in y).
    """
    B, C, H, W = x.shape
    HW = H * W
    if fn is None:
        fn = lambda y: y
    if c_out is None:
        c_out = C
    if out_dtype is None:
        out_dtype = x.dtype
    fn_params = tuple(jnp.asarray(p) for p in fn_params)

    # Lane-dense last dim: pad H*W up to a multiple of 128 (stats masked in-kernel).
    HWp = 128 * pl.cdiv(HW, 128)
    x3 = x.reshape(B, C, HW)                                  # native dtype, no upcast here
    if HWp != HW:
        x3 = jnp.pad(x3, ((0, 0), (0, 0), (0, HWp - HW)))
    g2 = gamma.reshape(C, 1).astype(jnp.float32)
    b2 = beta.reshape(C, 1).astype(jnp.float32)

    # ---- block-size selection: pack samples per step, keep >= 2 steps when B >= 2 ----
    in_item = jnp.dtype(x.dtype).itemsize
    out_item = jnp.dtype(out_dtype).itemsize
    per_sample = C * HWp * in_item + c_out * HWp * out_item   # bytes moved per sample
    if block_b is None:
        vmem_budget = 24 << 20                                # ~24 MiB double-buffered slab,
        bt = max(1, min(B, vmem_budget // max(1, 2 * per_sample)))  # safe on v7x (64 MiB VMEM)
        if B >= 2:
            bt = min(bt, pl.cdiv(B, 2))                       # >= 2 grid steps -> both v7x TCs
    else:
        bt = max(1, min(block_b, B))
    while B % bt != 0:                                        # grid must tile B exactly
        bt -= 1

    in_specs = [
        pl.BlockSpec((bt, C, HWp), lambda b: (b, 0, 0)),
        pl.BlockSpec((C, 1), lambda b: (0, 0)),
        pl.BlockSpec((C, 1), lambda b: (0, 0)),
    ]
    for p in fn_params:
        in_specs.append(pl.BlockSpec(p.shape, lambda b, _nd=p.ndim: (0,) * _nd))

    kern = functools.partial(_prenorm_kernel, fn=fn, eps=float(eps),
                             n_fn_params=len(fn_params), hw_valid=HW,
                             apply_beta=not fold_beta_into_fn)

    out = pl.pallas_call(
        kern,
        out_shape=jax.ShapeDtypeStruct((B, c_out, HWp), out_dtype),
        grid=(B // bt,),                                      # batch-parallel grid
        in_specs=in_specs,
        out_specs=pl.BlockSpec((bt, c_out, HWp), lambda b: (b, 0, 0)),
        compiler_params=pltpu.CompilerParams(
            dimension_semantics=("parallel",),
            vmem_limit_bytes=48 << 20),
    )(x3, g2, b2, *fn_params)

    if HWp != HW:
        out = out[:, :, :HW]
    return out.reshape(B, c_out, H, W)


# ----------------------------------------------------------------------------
# Demo `fn`: pointwise 1x1 channel-mixing conv, batched over the Bt block.
#   w is pre-cast to bf16 in the wrapper; bias already has beta folded in (f32).
# ----------------------------------------------------------------------------
def pointwise_conv_fn(y, w_bf16, bias):
    # y: (Bt, C, HWp) f32, w_bf16: (Cout, Cin) bf16, bias: (Cout, 1) f32.
    # One MXU matmul per block (weight pushed once), f32 accumulation.
    out = jnp.einsum('oc,bch->boh', w_bf16, y.astype(jnp.bfloat16),
                     preferred_element_type=jnp.float32)
    return out + bias


# ----------------------------------------------------------------------------
# Pure-JAX reference (for correctness validation)
# ----------------------------------------------------------------------------
def _instance_norm_ref(x, gamma, beta, eps=1e-5):
    mean = x.mean(axis=(2, 3), keepdims=True)
    var = ((x - mean) ** 2).mean(axis=(2, 3), keepdims=True)
    return ((x - mean) * jax.lax.rsqrt(var + eps)
            * gamma[None, :, None, None] + beta[None, :, None, None])


# ----------------------------------------------------------------------------
if __name__ == "__main__":
    B, C, H, W = 2, 32, 16, 16          # dim = 32 channels; H*W = 256 (already lane-dense)
    eps = 1e-5

    root = jax.random.PRNGKey(0)
    kx, kg, kb, kw, kbb = jax.random.split(root, 5)
    x = jax.random.normal(kx, (B, C, H, W), jnp.float32)
    gamma = 1.0 + 0.1 * jax.random.normal(kg, (C,), jnp.float32)
    beta = 0.1 * jax.random.normal(kb, (C,), jnp.float32)
    fn_w = 0.1 * jax.random.normal(kw, (C, C), jnp.float32)
    fn_b = 0.1 * jax.random.normal(kbb, (C,), jnp.float32)

    # 1) PreNorm with fn = identity (pure InstanceNorm2d(affine=True) path)
    out_norm = jax.block_until_ready(prenorm_forward(x, gamma, beta, eps=eps))
    y_ref = _instance_norm_ref(x, gamma, beta, eps=eps)
    assert out_norm.shape == (B, C, H, W), out_norm.shape
    assert jnp.all(jnp.isfinite(out_norm))
    assert jnp.allclose(out_norm, y_ref, atol=1e-4, rtol=1e-4)

    # 2) PreNorm with a fused pointwise-conv fn (norm + fn in one pallas_call).
    #    Wrapper-side prep: weight pre-cast to bf16, beta folded into the conv bias.
    w_bf16 = fn_w.astype(jnp.bfloat16)
    bias_folded = (fn_w @ beta + fn_b).reshape(C, 1).astype(jnp.float32)
    out_full = jax.block_until_ready(
        prenorm_forward(x, gamma, beta,
                        fn=pointwise_conv_fn,
                        fn_params=(w_bf16, bias_folded),
                        c_out=C, eps=eps,
                        fold_beta_into_fn=True,
                        out_dtype=jnp.float32))
    full_ref = jnp.einsum('oc,bchw->bohw', fn_w, y_ref) + fn_b[None, :, None, None]
    assert out_full.shape == (B, C, H, W), out_full.shape
    assert jnp.all(jnp.isfinite(out_full))
    assert jnp.allclose(out_full, full_ref, atol=5e-2, rtol=5e-2)   # bf16 matmul tolerance

    # 3) Lane-padding path exercised once (H*W = 64 -> padded to 128, stats masked in-kernel)
    xs = jax.random.normal(kx, (2, C, 8, 8), jnp.float32)
    out_small = jax.block_until_ready(prenorm_forward(xs, gamma, beta, eps=eps))
    assert jnp.allclose(out_small, _instance_norm_ref(xs, gamma, beta, eps=eps),
                        atol=1e-4, rtol=1e-4)

    print("KERNEL_OK")
</pallas_src>

<mosaic_0001>
module attributes {stable_mosaic.version = 11 : i64} {
  func.func @_prenorm_kernel(%arg0: i32, %arg1: memref<1x32x256xf32, #tpu.memory_space<vmem>>, %arg2: memref<32x1xf32, #tpu.memory_space<vmem>>, %arg3: memref<32x1xf32, #tpu.memory_space<vmem>>, %arg4: memref<1x32x256xf32, #tpu.memory_space<vmem>>) attributes {dimension_semantics = [#tpu.dimension_semantics<parallel>], iteration_bounds = array<i64: 2>, scalar_prefetch = 0 : i64, scratch_operands = 0 : i64, tpu.core_type = #tpu.core_type<tc>, window_params = [{transform_indices = @transform_0, window_bounds = array<i64: 1, 32, 256>}, {pipeline_mode = #tpu.pipeline_mode<synchronous>, transform_indices = @transform_1, window_bounds = array<i64: 32, 1>}, {pipeline_mode = #tpu.pipeline_mode<synchronous>, transform_indices = @transform_2, window_bounds = array<i64: 32, 1>}, {transform_indices = @transform_3, window_bounds = array<i64: 1, 32, 256>}]} {
    %c0 = arith.constant 0 : index
    %c0_0 = arith.constant 0 : index
    %c0_1 = arith.constant 0 : index
    %0 = vector.load %arg1[%c0, %c0_0, %c0_1] : memref<1x32x256xf32, #tpu.memory_space<vmem>>, vector<1x32x256xf32>
    %cst = arith.constant dense<0.000000e+00> : vector<1x32xf32>
    %1 = vector.multi_reduction <add>, %0, %cst [2] : vector<1x32x256xf32> to vector<1x32xf32>
    %2 = vector.shape_cast %1 : vector<1x32xf32> to vector<1x32x1xf32>
    %cst_2 = arith.constant 3.906250e-03 : f32
    %3 = vector.broadcast %cst_2 : f32 to vector<1x32x1xf32>
    %4 = arith.mulf %2, %3 : vector<1x32x1xf32>
    %5 = vector.broadcast %4 : vector<1x32x1xf32> to vector<1x32x256xf32>
    %6 = arith.subf %0, %5 : vector<1x32x256xf32>
    %7 = arith.mulf %6, %6 : vector<1x32x256xf32>
    %cst_3 = arith.constant dense<0.000000e+00> : vector<1x32xf32>
    %8 = vector.multi_reduction <add>, %7, %cst_3 [2] : vector<1x32x256xf32> to vector<1x32xf32>
    %9 = vector.shape_cast %8 : vector<1x32xf32> to vector<1x32x1xf32>
    %cst_4 = arith.constant 3.906250e-03 : f32
    %10 = vector.broadcast %cst_4 : f32 to vector<1x32x1xf32>
    %11 = arith.mulf %9, %10 : vector<1x32x1xf32>
    %cst_5 = arith.constant 0.000000e+00 : f32
    %12 = vector.broadcast %cst_5 : f32 to vector<1x32x1xf32>
    %13 = arith.maximumf %11, %12 : vector<1x32x1xf32>
    %cst_6 = arith.constant 9.99999974E-6 : f32
    %14 = vector.broadcast %cst_6 : f32 to vector<1x32x1xf32>
    %15 = arith.addf %13, %14 : vector<1x32x1xf32>
    %16 = math.rsqrt %15 : vector<1x32x1xf32>
    %c0_7 = arith.constant 0 : index
    %c0_8 = arith.constant 0 : index
    %17 = vector.load %arg2[%c0_7, %c0_8] : memref<32x1xf32, #tpu.memory_space<vmem>>, vector<32x1xf32>
    %18 = vector.shape_cast %17 : vector<32x1xf32> to vector<1x32x1xf32>
    %19 = arith.mulf %16, %18 : vector<1x32x1xf32>
    %20 = vector.broadcast %19 : vector<1x32x1xf32> to vector<1x32x256xf32>
    %21 = arith.mulf %6, %20 : vector<1x32x256xf32>
    %c0_9 = arith.constant 0 : index
    %c0_10 = arith.constant 0 : index
    %22 = vector.load %arg3[%c0_9, %c0_10] : memref<32x1xf32, #tpu.memory_space<vmem>>, vector<32x1xf32>
    %23 = vector.shape_cast %22 : vector<32x1xf32> to vector<1x32x1xf32>
    %24 = vector.broadcast %23 : vector<1x32x1xf32> to vector<1x32x256xf32>
    %25 = arith.addf %21, %24 : vector<1x32x256xf32>
    %c0_11 = arith.constant 0 : index
    %c0_12 = arith.constant 0 : index
    %c0_13 = arith.constant 0 : index
    %26 = vector.load %arg4[%c0_11, %c0_12, %c0_13] : memref<1x32x256xf32, #tpu.memory_space<vmem>>, vector<1x32x256xf32>
    tpu.vector_store %arg4[%c0_11, %c0_12, %c0_13], %25 {strides = array<i32>} : memref<1x32x256xf32, #tpu.memory_space<vmem>>, vector<1x32x256xf32>,
    return
  }
  func.func @transform_0(%arg0: i32) -> (i32, i32, i32) {
    %c0_i32 = arith.constant 0 : i32
    %c0_i32_0 = arith.constant 0 : i32
    %c0_i32_1 = arith.constant 0 : i32
    return %arg0, %c0_i32, %c0_i32_0 : i32, i32, i32
  }
  func.func @transform_1(%arg0: i32) -> (i32, i32) {
    %c0_i32 = arith.constant 0 : i32
    %c0_i32_0 = arith.constant 0 : i32
    %c0_i32_1 = arith.constant 0 : i32
    return %c0_i32, %c0_i32_0 : i32, i32
  }
  func.func @transform_2(%arg0: i32) -> (i32, i32) {
    %c0_i32 = arith.constant 0 : i32
    %c0_i32_0 = arith.constant 0 : i32
    %c0_i32_1 = arith.constant 0 : i32
    return %c0_i32, %c0_i32_0 : i32, i32
  }
  func.func @transform_3(%arg0: i32) -> (i32, i32, i32) {
    %c0_i32 = arith.constant 0 : i32
    %c0_i32_0 = arith.constant 0 : i32
    %c0_i32_1 = arith.constant 0 : i32
    return %arg0, %c0_i32, %c0_i32_0 : i32, i32, i32
  }
}

</mosaic_0001>

<llo_original>
// kernel: tpu_custom_call.1
$region0: #{tpu_custom_call.1}
  #allocation0 [shape = 'u32[]', space=smem, size = 0x4, offset = 0x4, fixed_abs, tag = 'smem constant byte address 0x4 - core index']
  #allocation1 [shape = 'u32[144,128]{1,0:T(1,128)}', space=vmem, size = 0x12000, scoped, tag = 'internal scratch']
  %s0 = inlined_call_operand.hbm [shape: f32[2,32,256], index: 0, kind: input, shape index: {}]
  %s1 = inlined_call_operand.vmem [shape: f32[32,1], index: 1, kind: input, shape index: {}]
  %s2 = inlined_call_operand.vmem [shape: f32[32,1], index: 2, kind: input, shape index: {}]
  %s3 = inlined_call_operand.hbm [shape: f32[2,32,256], index: 3, kind: output, shape index: {}]
  %s4 = sld [smem:[#allocation0]]
  $region49: #{tpu_custom_call.1} parent=0
    _
  %s6 = ssub.s32 1, %s4
  %s7 = scalar_select 0, %s6, %s4
  $region1: #{tpu_custom_call.1} parent=0
    #allocation2 [shape = 'u8[65536]{0}', space=vmem, size = 0x10000, scoped, tag = 'input window, operand 0']
    #allocation3 [shape = 's32[2]{0}', space=sflag, size = 0x8, scoped, tag = 'scoped memory for tpu_custom_call.1']
    #allocation4 [shape = 's32[2]{0}', space=sflag, size = 0x8, scoped, tag = 'scoped memory for tpu_custom_call.1']
    #allocation5 [shape = 'u8[65536]{0}', space=vmem, size = 0x10000, scoped, tag = 'output window, operand 0']
    %8 = vsyncpa [#allocation3], 0
    %s9 = scalar_lea.sflag [#allocation3], 1
    %10 = vsyncpa %s9, 0
    %11 = vsyncpa [#allocation4], 0
    %s12 = scalar_lea.sflag [#allocation4], 1
    %13 = vsyncpa %s12, 0
    loop: start=0, step=1, limit=4
    $region2: #{tpu_custom_call.1} parent=1 // loop_pre_header
      _
    $region3: #{tpu_custom_call.1} parent=1 // loop_header
      %s15 = sphi 0, %s19
      %p16 = scmp.ge.s32.totalorder %s15, 4
      %s25 = sphi 0, %s27
      %s28 = sphi 0, %s25
      %s29 = sphi 0, %s28
      %s45 = sphi 0, %s29
      %s49 = sphi 0, %s49
      %s51 = sphi 0, %s49
      %s52 = sphi 0, %s51
      %s66 = sphi 0, %s52
      %s70 = sphi 0, %s70
      %s72 = sphi 0, %s70
      %s73 = sphi 0, %s72
      %s87 = sphi 0, %s73
      %s93 = sphi 0, %s95
      %s96 = sphi 0, %s93
      %s97 = sphi 0, %s96
      %s113 = sphi 0, %s97
    $region4: #{tpu_custom_call.1} parent=1 // loop_header_branch
      %18 = sbr.rel (%p16) target = $region8
    $region5: #{tpu_custom_call.1} parent=1 // loop_body
      %s20 = ssub.s32 %s15, 1
      %s21 = ssub.s32 %s15, 2
      %s22 = sadd.s32 %s15, 1
      %s23 = ssub.s32 %s15, %s22
      %p24 = scmp.eq.s32.totalorder %s23, 0
      %s26 = sadd.s32 %s25, 1
      %s27 = scalar_select %p24, %s25, %s26
      %p30 = pneg %p24
      %p31 = scmp.eq.s32.totalorder %s15, 1
      %p32 = por %p30, %p31
      %p33 = scmp.ne.s32.totalorder %s25, %s28
      %p34 = scmp.eq.s32.totalorder %s15, 0
      %p35 = por %p33, %p34
      %p36 = scmp.ne.s32.totalorder %s25, %s28
      %p37 = scmp.eq.s32.totalorder %s20, 1
      %p38 = por %p36, %p37
      %p39 = scmp.ne.s32.totalorder %s28, %s29
      %p40 = scmp.eq.s32.totalorder %s20, 0
      %p41 = por %p39, %p40
      %p42 = scmp.ne.s32.totalorder %s28, %s29
      %p43 = scmp.eq.s32.totalorder %s21, 1
      %p44 = por %p42, %p43
      %p46 = scmp.ne.s32.totalorder %s29, %s45
      %p47 = scmp.eq.s32.totalorder %s21, 0
      %p48 = por %p46, %p47
      %s50 = sadd.s32 %s49, 1
      %p53 = scmp.eq.s32.totalorder %s15, 1
      %p54 = scmp.ne.s32.totalorder %s49, %s51
      %p55 = scmp.eq.s32.totalorder %s15, 0
      %p56 = por %p54, %p55
      %p57 = scmp.ne.s32.totalorder %s49, %s51
      %p58 = scmp.eq.s32.totalorder %s20, 1
      %p59 = por %p57, %p58
      %p60 = scmp.ne.s32.totalorder %s51, %s52
      %p61 = scmp.eq.s32.totalorder %s20, 0
      %p62 = por %p60, %p61
      %p63 = scmp.ne.s32.totalorder %s51, %s52
      %p64 = scmp.eq.s32.totalorder %s21, 1
      %p65 = por %p63, %p64
      %p67 = scmp.ne.s32.totalorder %s52, %s66
      %p68 = scmp.eq.s32.totalorder %s21, 0
      %p69 = por %p67, %p68
      %s71 = sadd.s32 %s70, 1
      %p74 = scmp.eq.s32.totalorder %s15, 1
      %p75 = scmp.ne.s32.totalorder %s70, %s72
      %p76 = scmp.eq.s32.totalorder %s15, 0
      %p77 = por %p75, %p76
      %p78 = scmp.ne.s32.totalorder %s70, %s72
      %p79 = scmp.eq.s32.totalorder %s20, 1
      %p80 = por %p78, %p79
      %p81 = scmp.ne.s32.totalorder %s72, %s73
      %p82 = scmp.eq.s32.totalorder %s20, 0
      %p83 = por %p81, %p82
      %p84 = scmp.ne.s32.totalorder %s72, %s73
      %p85 = scmp.eq.s32.totalorder %s21, 1
      %p86 = por %p84, %p85
      %p88 = scmp.ne.s32.totalorder %s73, %s87
      %p89 = scmp.eq.s32.totalorder %s21, 0
      %p90 = por %p88, %p89
      %s91 = ssub.s32 %s15, %s22
      %p92 = scmp.eq.s32.totalorder %s91, 0
      %s94 = sadd.s32 %s93, 1
      %s95 = scalar_select %p92, %s93, %s94
      %p98 = pneg %p92
      %p99 = scmp.eq.s32.totalorder %s15, 1
      %p100 = por %p98, %p99
      %p101 = scmp.ne.s32.totalorder %s93, %s96
      %p102 = scmp.eq.s32.totalorder %s15, 0
      %p103 = por %p101, %p102
      %p104 = scmp.ne.s32.totalorder %s93, %s96
      %p105 = scmp.eq.s32.totalorder %s20, 1
      %p106 = por %p104, %p105
      %p107 = scmp.ne.s32.totalorder %s96, %s97
      %p108 = scmp.eq.s32.totalorder %s20, 0
      %p109 = por %p107, %p108
      %p110 = scmp.ne.s32.totalorder %s96, %s97
      %p111 = scmp.eq.s32.totalorder %s21, 1
      %p112 = por %p110, %p111
      %p114 = scmp.ne.s32.totalorder %s97, %s113
      %p115 = scmp.eq.s32.totalorder %s21, 0
      %p116 = por %p114, %p115
      %p117 = scmp.le.s32.totalorder 1, %s15
      %p118 = scmp.lt.s32.totalorder %s15, 3
      %p119 = pnand %p117, %p118
      %p120 = pneg %p119
      // Predicated region
      $region9: #{tpu_custom_call.1} parent=5 // pred_check
        _
      $region10: #{tpu_custom_call.1} parent=5 // pred_check_branch
        %122 = sbr.rel (%p119) target = $region12
      $region11: #{tpu_custom_call.1} parent=5 // pred_region
        %s123 = ssub.s32 %s15, 1
        // Predicated region
        $region13: #{tpu_custom_call.1} parent=11 // pred_check
          %p124 = pneg %p62
        $region14: #{tpu_custom_call.1} parent=11 // pred_check_branch
          %126 = sbr.rel (%p124) target = $region16
        $region15: #{tpu_custom_call.1} parent=11 // pred_region
          _
        $region16: #{tpu_custom_call.1} parent=11 // pred_fallthru
          _
        // Predicated region
        $region17: #{tpu_custom_call.1} parent=11 // pred_check
          %p127 = pneg %p83
        $region18: #{tpu_custom_call.1} parent=11 // pred_check_branch
          %129 = sbr.rel (%p127) target = $region20
        $region19: #{tpu_custom_call.1} parent=11 // pred_region
          _
        $region20: #{tpu_custom_call.1} parent=11 // pred_fallthru
          _
      $region12: #{tpu_custom_call.1} parent=5 // pred_fallthru
        _
      %p130 = scmp.lt.s32.totalorder %s15, 2
      // Predicated region
      $region21: #{tpu_custom_call.1} parent=5 // pred_check
        %p131 = pneg %p130
      $region22: #{tpu_custom_call.1} parent=5 // pred_check_branch
        %133 = sbr.rel (%p131) target = $region24
      $region23: #{tpu_custom_call.1} parent=5 // pred_region
        // Predicated region
        $region25: #{tpu_custom_call.1} parent=23 // pred_check
          %p134 = pneg %p35
        $region26: #{tpu_custom_call.1} parent=23 // pred_check_branch
          %136 = sbr.rel (%p134) target = $region28
        $region27: #{tpu_custom_call.1} parent=23 // pred_region
          %s137 = sand.u32 %s25, 1
          %s138 = scalar_lea.sflag [#allocation3], %s137
          %s139 = sand.u32 %s25, 1
          %s140 = smul.addr %s139, 64
          %s141 = scalar_lea.vmem [#allocation2], %s140
          %s143 = ssub.s32 1024, 1024
          %144 = vsyncadd %s138, %s143
          %s145 = smul.addr %s15, 8
          %s146 = smul.addr %s145, 128
          %s147 = scalar_lea.hbm %s0, %s146
          %s148 = sshll.u32 %s141, 4
          %s149 = int_to_ptr.vmem [resolvable:$true] %s148
          %154 = dma.hbm_to_vmem [thread:$0]  %s147, 1024, %s149, %s138, 256, 256, 16
        $region28: #{tpu_custom_call.1} parent=23 // pred_fallthru
          _
      $region24: #{tpu_custom_call.1} parent=5 // pred_fallthru
        _
      %p155 = scmp.le.s32.totalorder 1, %s15
      %p156 = scmp.lt.s32.totalorder %s15, 3
      %p157 = pnand %p155, %p156
      %p158 = pneg %p157
      // Predicated region
      $region29: #{tpu_custom_call.1} parent=5 // pred_check
        _
      $region30: #{tpu_custom_call.1} parent=5 // pred_check_branch
        %160 = sbr.rel (%p157) target = $region32
      $region31: #{tpu_custom_call.1} parent=5 // pred_region
        %s161 = ssub.s32 %s15, 1
        %s162 = sand.u32 %s28, 1
        %s163 = scalar_lea.sflag [#allocation3], %s162
        %s164 = sand.u32 %s28, 1
        %s165 = smul.addr %s164, 64
        %s166 = scalar_lea.vmem [#allocation2], %s165
        // Predicated region
        $region33: #{tpu_custom_call.1} parent=31 // pred_check
          %p167 = pneg %p41
        $region34: #{tpu_custom_call.1} parent=31 // pred_check_branch
          %169 = sbr.rel (%p167) target = $region36
        $region35: #{tpu_custom_call.1} parent=31 // pred_region
          %170 = dma.done %s163, 1024
        $region36: #{tpu_custom_call.1} parent=31 // pred_fallthru
          _
        %s171 = sand.u32 %s28, 1
        %s172 = scalar_lea.sflag [#allocation3], %s171
        %s173 = sand.u32 %s28, 1
        %s174 = smul.addr %s173, 64
        %s175 = scalar_lea.vmem [#allocation2], %s174
        %p176 = pneg %p41
        %p177 = pneg %p38
        %p178 = pneg %p62
        %p179 = pneg %p59
        %p180 = pneg %p83
        %p181 = pneg %p80
        %p182 = pneg %p109
        %p183 = pneg %p106
        %s184 = sand.u32 %s96, 1
        %s185 = scalar_lea.sflag [#allocation4], %s184
        %s186 = sand.u32 %s96, 1
        %s187 = smul.addr %s186, 64
        %s188 = scalar_lea.vmem [#allocation5], %s187
        %v189 = vld [vmem:[%s166] sm:$0xff]
        %v190 = vld [vmem:[%s166 + $0x8] sm:$0xff]
        %v191 = vld [vmem:[%s166 + $0x10] sm:$0xff]
        %v192 = vld [vmem:[%s166 + $0x18] sm:$0xff]
        %v193 = vld [vmem:[%s166 + $0x20] sm:$0xff]
        %v194 = vld [vmem:[%s166 + $0x28] sm:$0xff]
        %v195 = vld [vmem:[%s166 + $0x30] sm:$0xff]
        %v196 = vld [vmem:[%s166 + $0x38] sm:$0xff]
        %v197 = vadd.f32 %v189, %v190
        %198 = vadd.xlane.f32.xlu0 %v197
        %v199 = vpop.xlane.xlu0 %198
        %v200 = vadd.f32 %v191, %v192
        %201 = vadd.xlane.f32.xlu0 %v200
        %v202 = vpop.xlane.xlu0 %201
        %v203 = vadd.f32 %v193, %v194
        %204 = vadd.xlane.f32.xlu0 %v203
        %v205 = vpop.xlane.xlu0 %204
        %v206 = vadd.f32 %v195, %v196
        %207 = vadd.xlane.f32.xlu0 %v206
        %v208 = vpop.xlane.xlu0 %207
        %v209 = vmul.f32 %v199, 0.00390625
        %v210 = vmul.f32 %v202, 0.00390625
        %v211 = vmul.f32 %v205, 0.00390625
        %v212 = vmul.f32 %v208, 0.00390625
        %v213 = vsub.f32 %v189, %v209
        %v214 = vsub.f32 %v190, %v209
        %v215 = vsub.f32 %v191, %v210
        %v216 = vsub.f32 %v192, %v210
        %v217 = vsub.f32 %v193, %v211
        %v218 = vsub.f32 %v194, %v211
        %v219 = vsub.f32 %v195, %v212
        %v220 = vsub.f32 %v196, %v212
        %v221 = vmul.f32 %v213, %v213
        %v222 = vmul.f32 %v214, %v214
        %v223 = vmul.f32 %v215, %v215
        %v224 = vmul.f32 %v216, %v216
        %v225 = vmul.f32 %v217, %v217
        %v226 = vmul.f32 %v218, %v218
        %v227 = vmul.f32 %v219, %v219
        %v228 = vmul.f32 %v220, %v220
        %v229 = vadd.f32 %v221, %v222
        %230 = vadd.xlane.f32.xlu0 %v229
        %v231 = vpop.xlane.xlu0 %230
        %v232 = vadd.f32 %v223, %v224
        %233 = vadd.xlane.f32.xlu0 %v232
        %v234 = vpop.xlane.xlu0 %233
        %v235 = vadd.f32 %v225, %v226
        %236 = vadd.xlane.f32.xlu0 %v235
        %v237 = vpop.xlane.xlu0 %236
        %v238 = vadd.f32 %v227, %v228
        %239 = vadd.xlane.f32.xlu0 %v238
        %v240 = vpop.xlane.xlu0 %239
        %v241 = vmul.f32 %v231, 0.00390625
        %v242 = vmul.f32 %v234, 0.00390625
        %v243 = vmul.f32 %v237, 0.00390625
        %v244 = vmul.f32 %v240, 0.00390625
        %v245 = vmax.f32 %v241, 0.0
        %v246 = vmax.f32 %v242, 0.0
        %v247 = vmax.f32 %v243, 0.0
        %v248 = vmax.f32 %v244, 0.0
        %v249 = vadd.f32 %v245, 1e-05
        %v250 = vadd.f32 %v246, 1e-05
        %v251 = vadd.f32 %v247, 1e-05
        %v252 = vadd.f32 %v248, 1e-05
        %v253 = vrsqrt.pop %v249
        %v254 = vrsqrt.pop %v250
        %v255 = vrsqrt.pop %v251
        %v256 = vrsqrt.pop %v252
        %v257 = vld [vmem:[%s1] sm:$0xff]
        %v258 = vld [vmem:[%s1 + $0x8] sm:$0xff]
        %v259 = vld [vmem:[%s1 + $0x10] sm:$0xff]
        %v260 = vld [vmem:[%s1 + $0x18] sm:$0xff]
        %v261 = vmul.f32 %v253, %v257
        %v262 = vmul.f32 %v254, %v258
        %v263 = vmul.f32 %v255, %v259
        %v264 = vmul.f32 %v256, %v260
        %266 = vset.pattern.permute.xlu0 0
        %267 = vperm.xlu0 %266, %v261
        %v268 = vpop.permute.xlu0 %267
        %271 = vset.pattern.permute.xlu0 0
        %272 = vperm.xlu0 %271, %v262
        %v273 = vpop.permute.xlu0 %272
        %276 = vset.pattern.permute.xlu0 0
        %277 = vperm.xlu0 %276, %v263
        %v278 = vpop.permute.xlu0 %277
        %281 = vset.pattern.permute.xlu0 0
        %282 = vperm.xlu0 %281, %v264
        %v283 = vpop.permute.xlu0 %282
        %v285 = vmul.f32 %v213, %v268
        %v286 = vmul.f32 %v214, %v268
        %v287 = vmul.f32 %v215, %v273
        %v288 = vmul.f32 %v216, %v273
        %v289 = vmul.f32 %v217, %v278
        %v290 = vmul.f32 %v218, %v278
        %v291 = vmul.f32 %v219, %v283
        %v292 = vmul.f32 %v220, %v283
        %v293 = vld [vmem:[%s2] sm:$0xff]
        %v294 = vld [vmem:[%s2 + $0x8] sm:$0xff]
        %v295 = vld [vmem:[%s2 + $0x10] sm:$0xff]
        %v296 = vld [vmem:[%s2 + $0x18] sm:$0xff]
        %298 = vset.pattern.permute.xlu0 0
        %299 = vperm.xlu0 %298, %v293
        %v300 = vpop.permute.xlu0 %299
        %303 = vset.pattern.permute.xlu0 0
        %304 = vperm.xlu0 %303, %v294
        %v305 = vpop.permute.xlu0 %304
        %308 = vset.pattern.permute.xlu0 0
        %309 = vperm.xlu0 %308, %v295
        %v310 = vpop.permute.xlu0 %309
        %313 = vset.pattern.permute.xlu0 0
        %314 = vperm.xlu0 %313, %v296
        %v315 = vpop.permute.xlu0 %314
        %v317 = vadd.f32 %v285, %v300
        %v318 = vadd.f32 %v286, %v300
        %v319 = vadd.f32 %v287, %v305
        %v320 = vadd.f32 %v288, %v305
        %v321 = vadd.f32 %v289, %v310
        %v322 = vadd.f32 %v290, %v310
        %v323 = vadd.f32 %v291, %v315
        %v324 = vadd.f32 %v292, %v315
        %325 = vst [vmem:[%s188] sm:$0xff] %v317
        %326 = vst [vmem:[%s188 + $0x8] sm:$0xff] %v318
        %327 = vst [vmem:[%s188 + $0x10] sm:$0xff] %v319
        %328 = vst [vmem:[%s188 + $0x18] sm:$0xff] %v320
        %329 = vst [vmem:[%s188 + $0x20] sm:$0xff] %v321
        %330 = vst [vmem:[%s188 + $0x28] sm:$0xff] %v322
        %331 = vst [vmem:[%s188 + $0x30] sm:$0xff] %v323
        %332 = vst [vmem:[%s188 + $0x38] sm:$0xff] %v324
        %s333 = sand.u32 %s96, 1
        %s334 = scalar_lea.sflag [#allocation4], %s333
        %s335 = sand.u32 %s96, 1
        %s336 = smul.addr %s335, 64
        %s337 = scalar_lea.vmem [#allocation5], %s336
        // Predicated region
        $region37: #{tpu_custom_call.1} parent=31 // pred_check
          %p338 = pneg %p106
        $region38: #{tpu_custom_call.1} parent=31 // pred_check_branch
          %340 = sbr.rel (%p338) target = $region40
        $region39: #{tpu_custom_call.1} parent=31 // pred_region
          %s342 = ssub.s32 1024, 1024
          %343 = vsyncadd %s334, %s342
          %s344 = smul.addr %s20, 8
          %s345 = smul.addr %s344, 128
          %s346 = scalar_lea.hbm %s3, %s345
          %s347 = sshll.u32 %s337, 4
          %s348 = int_to_ptr.vmem [resolvable:$true] %s347
          %353 = dma.vmem_to_hbm [thread:$0]  %s348, 1024, %s346, %s334, 256, 256, 16
        $region40: #{tpu_custom_call.1} parent=31 // pred_fallthru
          _
      $region32: #{tpu_custom_call.1} parent=5 // pred_fallthru
        _
      %p354 = scmp.le.s32.totalorder 2, %s15
      // Predicated region
      $region41: #{tpu_custom_call.1} parent=5 // pred_check
        %p355 = pneg %p354
      $region42: #{tpu_custom_call.1} parent=5 // pred_check_branch
        %357 = sbr.rel (%p355) target = $region44
      $region43: #{tpu_custom_call.1} parent=5 // pred_region
        %s358 = ssub.s32 %s15, 2
        // Predicated region
        $region45: #{tpu_custom_call.1} parent=43 // pred_check
          %p359 = pneg %p112
        $region46: #{tpu_custom_call.1} parent=43 // pred_check_branch
          %361 = sbr.rel (%p359) target = $region48
        $region47: #{tpu_custom_call.1} parent=43 // pred_region
          %s362 = sand.u32 %s97, 1
          %s363 = scalar_lea.sflag [#allocation4], %s362
          %s364 = sand.u32 %s97, 1
          %s365 = smul.addr %s364, 64
          %s366 = scalar_lea.vmem [#allocation5], %s365
          %367 = dma.done %s363, 1024
        $region48: #{tpu_custom_call.1} parent=43 // pred_fallthru
          _
      $region44: #{tpu_custom_call.1} parent=5 // pred_fallthru
        _
    $region6: #{tpu_custom_call.1} parent=1 // loop_footer
      %s19 = sadd.s32 1, %s15
    $region7: #{tpu_custom_call.1} parent=1 // loop_footer_branch
      %14 = sbr.rel target = $region3
    $region8: #{tpu_custom_call.1} parent=1 // loop_exit
      _
    %368 = vsyncpa [#allocation3], 1
    %s369 = scalar_lea.sflag [#allocation3], 1
    %370 = vsyncpa %s369, 1
    %371 = vsyncpa [#allocation4], 1
    %s372 = scalar_lea.sflag [#allocation4], 1
    %373 = vsyncpa %s372, 1

</llo_original>
